<compile_context>
chip_gen: v7x
topology: tpu7x:2x2x1
jax: 0.10.0
libtpu: 0.0.40
codegen_flags: <defaults>
</compile_context>

<pallas_src>
import functools

import jax
import jax.numpy as jnp
from jax.experimental import pallas as pl
from jax.experimental.pallas import tpu as pltpu

_LANE = 128


def _round_up(n, m):
    return ((n + m - 1) // m) * m


def _cdiv(a, b):
    return -(-a // b)


def _pad2d(a, rows, cols):
    return jnp.pad(a, ((0, rows - a.shape[0]), (0, cols - a.shape[1])))


def _choose_tiling(batch, block_b):
    """Pick (batch_tile, padded_batch) minimizing padding waste.

    - tile is a multiple of 16 (bf16 sublane packing for the output block,
      covers the f32 input's multiple-of-8 requirement too),
    - padding per grid step is < 16 rows,
    - large single-step batches are split into >= 2 steps so the "parallel"
      grid axis can shard across both v7x TensorCores.
    """
    block_b = max(16, (block_b // 16) * 16)      # validate user-supplied tile
    n_steps = _cdiv(batch, block_b)
    if n_steps == 1 and batch > 512:
        n_steps = 2                              # keep both v7x TCs busy
    tb = _round_up(_cdiv(batch, n_steps), 16)
    return tb, n_steps * tb


def _sae_kernel(x_ref, w1_ref, b1_ref, w2_ref, b2_ref, w3_ref, b3_ref, o_ref):
    # AE1 encoder: Linear + ReLU.  x arrives as f32; cast to bf16 for the MXU.
    x = x_ref[...].astype(jnp.bfloat16)
    h1 = jnp.dot(x, w1_ref[...], preferred_element_type=jnp.float32)
    h1 = jnp.maximum(h1 + b1_ref[...], 0.0)

    # AE2 encoder: Linear + ReLU.
    h2 = jnp.dot(h1.astype(jnp.bfloat16), w2_ref[...],
                 preferred_element_type=jnp.float32)
    h2 = jnp.maximum(h2 + b2_ref[...], 0.0)

    # Classifier: Linear (logits), stored as bf16 (lane-dense padded width).
    logits = jnp.dot(h2.astype(jnp.bfloat16), w3_ref[...],
                     preferred_element_type=jnp.float32)
    o_ref[...] = (logits + b3_ref[...]).astype(o_ref.dtype)


def prepare_params(params):
    """Pad feature dims to the 128-lane width and cast once; reuse across calls.

    Returns (prepared_params, num_classes).  Zero padding propagates
    harmlessly through Linear+ReLU (padded lanes stay exactly zero).
    """
    w1, b1, w2, b2, w3, b3 = params
    d_in, h1 = w1.shape
    h2 = w2.shape[1]
    num_classes = w3.shape[1]
    h1p = _round_up(h1, _LANE)
    h2p = _round_up(h2, _LANE)
    cp = _round_up(num_classes, _LANE)

    w1_p = _pad2d(w1, d_in, h1p).astype(jnp.bfloat16)   # keep d_in unpadded
    w2_p = _pad2d(w2, h1p, h2p).astype(jnp.bfloat16)
    w3_p = _pad2d(w3, h2p, cp).astype(jnp.bfloat16)
    b1_p = _pad2d(b1.reshape(1, -1), 1, h1p).astype(jnp.float32)
    b2_p = _pad2d(b2.reshape(1, -1), 1, h2p).astype(jnp.float32)
    b3_p = _pad2d(b3.reshape(1, -1), 1, cp).astype(jnp.float32)
    return (w1_p, b1_p, w2_p, b2_p, w3_p, b3_p), num_classes


@functools.partial(jax.jit, static_argnames=("num_classes", "block_b"))
def stacked_autoencoder_forward(x, prepared, num_classes, *, block_b=1024):
    w1_p, b1_p, w2_p, b2_p, w3_p, b3_p = prepared
    B, d_in = x.shape
    h1p, h2p, cp = w1_p.shape[1], w2_p.shape[1], w3_p.shape[1]

    tb, bp = _choose_tiling(B, block_b)
    # Pad only the batch dim (< 16 rows per grid step); no feature pad/cast
    # pass over x in the wrapper.
    x_p = x.astype(jnp.float32)
    if bp != B:
        x_p = jnp.pad(x_p, ((0, bp - B), (0, 0)))

    const = lambda shape: pl.BlockSpec(shape, lambda i: (0, 0),
                                       memory_space=pltpu.VMEM)

    flops = 2 * bp * (d_in * h1p + h1p * h2p + h2p * cp)
    bytes_accessed = (
        bp * d_in * 4                                         # x (f32 read)
        + bp * cp * 2                                         # logits (bf16 write)
        + (w1_p.size + w2_p.size + w3_p.size) * 2             # bf16 weights
        + (b1_p.size + b2_p.size + b3_p.size) * 4)            # f32 biases

    out_p = pl.pallas_call(
        _sae_kernel,
        out_shape=jax.ShapeDtypeStruct((bp, cp), jnp.bfloat16),
        grid=(bp // tb,),
        in_specs=[
            pl.BlockSpec((tb, d_in), lambda i: (i, 0), memory_space=pltpu.VMEM),
            const((d_in, h1p)), const((1, h1p)),
            const((h1p, h2p)), const((1, h2p)),
            const((h2p, cp)), const((1, cp)),
        ],
        out_specs=pl.BlockSpec((tb, cp), lambda i: (i, 0),
                               memory_space=pltpu.VMEM),
        compiler_params=pltpu.CompilerParams(
            dimension_semantics=("parallel",)),
        cost_estimate=pl.CostEstimate(flops=flops, transcendentals=0,
                                      bytes_accessed=bytes_accessed),
    )(x_p, w1_p, b1_p, w2_p, b2_p, w3_p, b3_p)

    return out_p[:B, :num_classes]


def init_params(key, d_in, h1, h2, num_classes):
    ks = jax.random.split(key, 6)
    w1 = jax.random.normal(ks[0], (d_in, h1), jnp.float32) * (2.0 / d_in) ** 0.5
    b1 = jax.random.normal(ks[1], (h1,), jnp.float32) * 0.01
    w2 = jax.random.normal(ks[2], (h1, h2), jnp.float32) * (2.0 / h1) ** 0.5
    b2 = jax.random.normal(ks[3], (h2,), jnp.float32) * 0.01
    w3 = jax.random.normal(ks[4], (h2, num_classes), jnp.float32) * (2.0 / h2) ** 0.5
    b3 = jax.random.normal(ks[5], (num_classes,), jnp.float32) * 0.01
    return (w1, b1, w2, b2, w3, b3)


def _reference_forward(x, params):
    # Same numerics as the kernel up to the final bf16 store: bf16 dot
    # operands, f32 accumulation, f32 bias/ReLU.
    w1, b1, w2, b2, w3, b3 = params
    bf = jnp.bfloat16
    h1 = jnp.dot(x.astype(bf), w1.astype(bf),
                 preferred_element_type=jnp.float32) + b1
    h1 = jnp.maximum(h1, 0.0)
    h2 = jnp.dot(h1.astype(bf), w2.astype(bf),
                 preferred_element_type=jnp.float32) + b2
    h2 = jnp.maximum(h2, 0.0)
    return jnp.dot(h2.astype(bf), w3.astype(bf),
                   preferred_element_type=jnp.float32) + b3


if __name__ == "__main__":
    B, D_IN, H1, H2, NUM_CLASSES = 8, 64, 32, 16, 10

    key = jax.random.PRNGKey(0)
    kx, kp = jax.random.split(key)
    x = jax.random.normal(kx, (B, D_IN), jnp.float32)
    params = init_params(kp, D_IN, H1, H2, NUM_CLASSES)
    prepared, nc = prepare_params(params)

    # Small batch: single grid step, batch padded 8 -> 16.
    out = jax.block_until_ready(stacked_autoencoder_forward(x, prepared, nc))
    ref = _reference_forward(x, params)
    assert out.shape == (B, NUM_CLASSES)
    assert jnp.allclose(out.astype(jnp.float32), ref, atol=2e-2, rtol=2e-2)

    # Ragged larger batch with a small tile: exercises the multi-step parallel
    # grid, weight residency across iterations and the batch-pad path.
    x2 = jax.random.normal(jax.random.PRNGKey(1), (70, D_IN), jnp.float32)
    out2 = jax.block_until_ready(
        stacked_autoencoder_forward(x2, prepared, nc, block_b=16))
    ref2 = _reference_forward(x2, params)
    assert out2.shape == (70, NUM_CLASSES)
    assert jnp.allclose(out2.astype(jnp.float32), ref2, atol=2e-2, rtol=2e-2)

    print("KERNEL_OK")
</pallas_src>

<mosaic_0001>
module attributes {stable_mosaic.version = 11 : i64} {
  func.func @_sae_kernel(%arg0: i32, %arg1: memref<16x64xf32, #tpu.memory_space<vmem>>, %arg2: memref<64x128xbf16, #tpu.memory_space<vmem>>, %arg3: memref<1x128xf32, #tpu.memory_space<vmem>>, %arg4: memref<128x128xbf16, #tpu.memory_space<vmem>>, %arg5: memref<1x128xf32, #tpu.memory_space<vmem>>, %arg6: memref<128x128xbf16, #tpu.memory_space<vmem>>, %arg7: memref<1x128xf32, #tpu.memory_space<vmem>>, %arg8: memref<16x128xbf16, #tpu.memory_space<vmem>>) attributes {dimension_semantics = [#tpu.dimension_semantics<parallel>], iteration_bounds = array<i64: 1>, scalar_prefetch = 0 : i64, scratch_operands = 0 : i64, tpu.core_type = #tpu.core_type<tc>, window_params = [{transform_indices = @transform_0, window_bounds = array<i64: 16, 64>}, {pipeline_mode = #tpu.pipeline_mode<synchronous>, transform_indices = @transform_1, window_bounds = array<i64: 64, 128>}, {pipeline_mode = #tpu.pipeline_mode<synchronous>, transform_indices = @transform_2, window_bounds = array<i64: 1, 128>}, {pipeline_mode = #tpu.pipeline_mode<synchronous>, transform_indices = @transform_3, window_bounds = array<i64: 128, 128>}, {pipeline_mode = #tpu.pipeline_mode<synchronous>, transform_indices = @transform_4, window_bounds = array<i64: 1, 128>}, {pipeline_mode = #tpu.pipeline_mode<synchronous>, transform_indices = @transform_5, window_bounds = array<i64: 128, 128>}, {pipeline_mode = #tpu.pipeline_mode<synchronous>, transform_indices = @transform_6, window_bounds = array<i64: 1, 128>}, {transform_indices = @transform_7, window_bounds = array<i64: 16, 128>}]} {
    %c0 = arith.constant 0 : index
    %c0_0 = arith.constant 0 : index
    %0 = vector.load %arg1[%c0, %c0_0] : memref<16x64xf32, #tpu.memory_space<vmem>>, vector<16x64xf32>
    %1 = arith.truncf %0 : vector<16x64xf32> to vector<16x64xbf16>
    %c0_1 = arith.constant 0 : index
    %c0_2 = arith.constant 0 : index
    %2 = vector.load %arg2[%c0_1, %c0_2] : memref<64x128xbf16, #tpu.memory_space<vmem>>, vector<64x128xbf16>
    %cst = arith.constant dense<0.000000e+00> : vector<16x128xf32>
    %3 = tpu.matmul %1, %2, %cst {dimension_numbers = #tpu.dot_dimension_numbers<[1], [0], [0], [1], [0, 0, 1, 1], [], []>} : vector<16x64xbf16>, vector<64x128xbf16>, vector<16x128xf32> -> vector<16x128xf32>
    %c0_3 = arith.constant 0 : index
    %c0_4 = arith.constant 0 : index
    %4 = vector.load %arg3[%c0_3, %c0_4] : memref<1x128xf32, #tpu.memory_space<vmem>>, vector<1x128xf32>
    %5 = vector.broadcast %4 : vector<1x128xf32> to vector<16x128xf32>
    %6 = arith.addf %3, %5 : vector<16x128xf32>
    %cst_5 = arith.constant 0.000000e+00 : f32
    %7 = vector.broadcast %cst_5 : f32 to vector<16x128xf32>
    %8 = arith.maximumf %6, %7 : vector<16x128xf32>
    %9 = arith.truncf %8 : vector<16x128xf32> to vector<16x128xbf16>
    %c0_6 = arith.constant 0 : index
    %c0_7 = arith.constant 0 : index
    %10 = vector.load %arg4[%c0_6, %c0_7] : memref<128x128xbf16, #tpu.memory_space<vmem>>, vector<128x128xbf16>
    %cst_8 = arith.constant dense<0.000000e+00> : vector<16x128xf32>
    %11 = tpu.matmul %9, %10, %cst_8 {dimension_numbers = #tpu.dot_dimension_numbers<[1], [0], [0], [1], [0, 0, 1, 1], [], []>} : vector<16x128xbf16>, vector<128x128xbf16>, vector<16x128xf32> -> vector<16x128xf32>
    %c0_9 = arith.constant 0 : index
    %c0_10 = arith.constant 0 : index
    %12 = vector.load %arg5[%c0_9, %c0_10] : memref<1x128xf32, #tpu.memory_space<vmem>>, vector<1x128xf32>
    %13 = vector.broadcast %12 : vector<1x128xf32> to vector<16x128xf32>
    %14 = arith.addf %11, %13 : vector<16x128xf32>
    %cst_11 = arith.constant 0.000000e+00 : f32
    %15 = vector.broadcast %cst_11 : f32 to vector<16x128xf32>
    %16 = arith.maximumf %14, %15 : vector<16x128xf32>
    %17 = arith.truncf %16 : vector<16x128xf32> to vector<16x128xbf16>
    %c0_12 = arith.constant 0 : index
    %c0_13 = arith.constant 0 : index
    %18 = vector.load %arg6[%c0_12, %c0_13] : memref<128x128xbf16, #tpu.memory_space<vmem>>, vector<128x128xbf16>
    %cst_14 = arith.constant dense<0.000000e+00> : vector<16x128xf32>
    %19 = tpu.matmul %17, %18, %cst_14 {dimension_numbers = #tpu.dot_dimension_numbers<[1], [0], [0], [1], [0, 0, 1, 1], [], []>} : vector<16x128xbf16>, vector<128x128xbf16>, vector<16x128xf32> -> vector<16x128xf32>
    %c0_15 = arith.constant 0 : index
    %c0_16 = arith.constant 0 : index
    %20 = vector.load %arg7[%c0_15, %c0_16] : memref<1x128xf32, #tpu.memory_space<vmem>>, vector<1x128xf32>
    %21 = vector.broadcast %20 : vector<1x128xf32> to vector<16x128xf32>
    %22 = arith.addf %19, %21 : vector<16x128xf32>
    %23 = arith.truncf %22 : vector<16x128xf32> to vector<16x128xbf16>
    %c0_17 = arith.constant 0 : index
    %c0_18 = arith.constant 0 : index
    %24 = vector.load %arg8[%c0_17, %c0_18] : memref<16x128xbf16, #tpu.memory_space<vmem>>, vector<16x128xbf16>
    tpu.vector_store %arg8[%c0_17, %c0_18], %23 {strides = array<i32>} : memref<16x128xbf16, #tpu.memory_space<vmem>>, vector<16x128xbf16>,
    return
  }
  func.func @transform_0(%arg0: i32) -> (i32, i32) {
    %c0_i32 = arith.constant 0 : i32
    %c0_i32_0 = arith.constant 0 : i32
    return %arg0, %c0_i32 : i32, i32
  }
  func.func @transform_1(%arg0: i32) -> (i32, i32) {
    %c0_i32 = arith.constant 0 : i32
    %c0_i32_0 = arith.constant 0 : i32
    %c0_i32_1 = arith.constant 0 : i32
    return %c0_i32, %c0_i32_0 : i32, i32
  }
  func.func @transform_2(%arg0: i32) -> (i32, i32) {
    %c0_i32 = arith.constant 0 : i32
    %c0_i32_0 = arith.constant 0 : i32
    %c0_i32_1 = arith.constant 0 : i32
    return %c0_i32, %c0_i32_0 : i32, i32
  }
  func.func @transform_3(%arg0: i32) -> (i32, i32) {
    %c0_i32 = arith.constant 0 : i32
    %c0_i32_0 = arith.constant 0 : i32
    %c0_i32_1 = arith.constant 0 : i32
    return %c0_i32, %c0_i32_0 : i32, i32
  }
  func.func @transform_4(%arg0: i32) -> (i32, i32) {
    %c0_i32 = arith.constant 0 : i32
    %c0_i32_0 = arith.constant 0 : i32
    %c0_i32_1 = arith.constant 0 : i32
    return %c0_i32, %c0_i32_0 : i32, i32
  }
  func.func @transform_5(%arg0: i32) -> (i32, i32) {
    %c0_i32 = arith.constant 0 : i32
    %c0_i32_0 = arith.constant 0 : i32
    %c0_i32_1 = arith.constant 0 : i32
    return %c0_i32, %c0_i32_0 : i32, i32
  }
  func.func @transform_6(%arg0: i32) -> (i32, i32) {
    %c0_i32 = arith.constant 0 : i32
    %c0_i32_0 = arith.constant 0 : i32
    %c0_i32_1 = arith.constant 0 : i32
    return %c0_i32, %c0_i32_0 : i32, i32
  }
  func.func @transform_7(%arg0: i32) -> (i32, i32) {
    %c0_i32 = arith.constant 0 : i32
    %c0_i32_0 = arith.constant 0 : i32
    return %arg0, %c0_i32 : i32, i32
  }
}

</mosaic_0001>

<llo_original>
// kernel: stacked_autoencoder_forward.1
$region0: #{stacked_autoencoder_forward.1}
  #allocation0 [shape = 'u32[]', space=smem, size = 0x4, offset = 0x4, fixed_abs, tag = 'smem constant byte address 0x4 - core index']
  #allocation1 [shape = 'u32[144,128]{1,0:T(1,128)}', space=vmem, size = 0x12000, scoped, tag = 'internal scratch']
  %s0 = inlined_call_operand.vmem [shape: f32[16,64], index: 0, kind: input, shape index: {}]
  %s1 = inlined_call_operand.hbm [shape: bf16[64,128], index: 1, kind: input, shape index: {}]
  %s2 = inlined_call_operand.vmem [shape: f32[1,128], index: 2, kind: input, shape index: {}]
  %s3 = inlined_call_operand.hbm [shape: bf16[128,128], index: 3, kind: input, shape index: {}]
  %s4 = inlined_call_operand.vmem [shape: f32[1,128], index: 4, kind: input, shape index: {}]
  %s5 = inlined_call_operand.hbm [shape: bf16[128,128], index: 5, kind: input, shape index: {}]
  %s6 = inlined_call_operand.vmem [shape: f32[1,128], index: 6, kind: input, shape index: {}]
  %s7 = inlined_call_operand.vmem [shape: bf16[16,128], index: 7, kind: output, shape index: {}]
  %s8 = sld [smem:[#allocation0]]
  $region50: #{stacked_autoencoder_forward.1} parent=0
    _
  %s10 = ssub.s32 1, %s8
  %s11 = scalar_select 0, %s10, %s8
  $region1: #{stacked_autoencoder_forward.1} parent=0
    #allocation2 [shape = 'u8[16384]{0}', space=vmem, size = 0x4000, scoped, tag = 'input window, operand 1, single buffered']
    #allocation3 [shape = 's32[1]{0}', space=sflag, size = 0x4, scoped, tag = 'scoped memory for stacked_autoencoder_forward.1']
    #allocation4 [shape = 'u8[32768]{0}', space=vmem, size = 0x8000, scoped, tag = 'input window, operand 3, single buffered']
    #allocation5 [shape = 's32[1]{0}', space=sflag, size = 0x4, scoped, tag = 'scoped memory for stacked_autoencoder_forward.1']
    #allocation6 [shape = 'u8[32768]{0}', space=vmem, size = 0x8000, scoped, tag = 'input window, operand 5, single buffered']
    %12 = vsyncpa [#allocation3], 0
    %13 = vsyncpa [#allocation5], 0
    // Predicated region
    $region2: #{stacked_autoencoder_forward.1} parent=1 // pred_check
      _
    $region3: #{stacked_autoencoder_forward.1} parent=1 // pred_check_branch
      %15 = sbr.rel (0) target = $region5
    $region4: #{stacked_autoencoder_forward.1} parent=1 // pred_region
      _
    $region5: #{stacked_autoencoder_forward.1} parent=1 // pred_fallthru
      _
    // Predicated region
    $region6: #{stacked_autoencoder_forward.1} parent=1 // pred_check
      _
    $region7: #{stacked_autoencoder_forward.1} parent=1 // pred_check_branch
      %17 = sbr.rel (0) target = $region9
    $region8: #{stacked_autoencoder_forward.1} parent=1 // pred_region
      %s19 = ssub.s32 512, 512
      %20 = vsyncadd [#allocation3], %s19
      %s21 = sshll.u32 [#allocation2], 4
      %s22 = int_to_ptr.vmem [resolvable:$true] %s21
      %27 = dma.hbm_to_vmem [thread:$0]  %s1, 512, %s22, [#allocation3], 64, 64, 4
    $region9: #{stacked_autoencoder_forward.1} parent=1 // pred_fallthru
      _
    // Predicated region
    $region10: #{stacked_autoencoder_forward.1} parent=1 // pred_check
      _
    $region11: #{stacked_autoencoder_forward.1} parent=1 // pred_check_branch
      %29 = sbr.rel (0) target = $region13
    $region12: #{stacked_autoencoder_forward.1} parent=1 // pred_region
      _
    $region13: #{stacked_autoencoder_forward.1} parent=1 // pred_fallthru
      _
    // Predicated region
    $region14: #{stacked_autoencoder_forward.1} parent=1 // pred_check
      _
    $region15: #{stacked_autoencoder_forward.1} parent=1 // pred_check_branch
      %31 = sbr.rel (0) target = $region17
    $region16: #{stacked_autoencoder_forward.1} parent=1 // pred_region
      %s33 = ssub.s32 1024, 1024
      %34 = vsyncadd [#allocation5], %s33
      %s35 = sshll.u32 [#allocation4], 4
      %s36 = int_to_ptr.vmem [resolvable:$true] %s35
      %41 = dma.hbm_to_vmem [thread:$0]  %s3, 1024, %s36, [#allocation5], 64, 64, 4
    $region17: #{stacked_autoencoder_forward.1} parent=1 // pred_fallthru
      _
    // Predicated region
    $region18: #{stacked_autoencoder_forward.1} parent=1 // pred_check
      _
    $region19: #{stacked_autoencoder_forward.1} parent=1 // pred_check_branch
      %43 = sbr.rel (0) target = $region21
    $region20: #{stacked_autoencoder_forward.1} parent=1 // pred_region
      _
    $region21: #{stacked_autoencoder_forward.1} parent=1 // pred_fallthru
      _
    // Predicated region
    $region22: #{stacked_autoencoder_forward.1} parent=1 // pred_check
      _
    $region23: #{stacked_autoencoder_forward.1} parent=1 // pred_check_branch
      %45 = sbr.rel (0) target = $region25
    $region24: #{stacked_autoencoder_forward.1} parent=1 // pred_region
      %s47 = ssub.s32 1024, 1024
      %48 = vsyncadd [#allocation5], %s47
      %s49 = sshll.u32 [#allocation6], 4
      %s50 = int_to_ptr.vmem [resolvable:$true] %s49
      %55 = dma.hbm_to_vmem [thread:$0]  %s5, 1024, %s50, [#allocation5], 64, 64, 4
    $region25: #{stacked_autoencoder_forward.1} parent=1 // pred_fallthru
      _
    // Predicated region
    $region26: #{stacked_autoencoder_forward.1} parent=1 // pred_check
      _
    $region27: #{stacked_autoencoder_forward.1} parent=1 // pred_check_branch
      %57 = sbr.rel (0) target = $region29
    $region28: #{stacked_autoencoder_forward.1} parent=1 // pred_region
      _
    $region29: #{stacked_autoencoder_forward.1} parent=1 // pred_fallthru
      _
    // Predicated region
    $region30: #{stacked_autoencoder_forward.1} parent=1 // pred_check
      _
    $region31: #{stacked_autoencoder_forward.1} parent=1 // pred_check_branch
      %59 = sbr.rel (0) target = $region33
    $region32: #{stacked_autoencoder_forward.1} parent=1 // pred_region
      %60 = dma.done [#allocation3], 512
    $region33: #{stacked_autoencoder_forward.1} parent=1 // pred_fallthru
      _
    // Predicated region
    $region34: #{stacked_autoencoder_forward.1} parent=1 // pred_check
      _
    $region35: #{stacked_autoencoder_forward.1} parent=1 // pred_check_branch
      %62 = sbr.rel (0) target = $region37
    $region36: #{stacked_autoencoder_forward.1} parent=1 // pred_region
      %63 = dma.done [#allocation5], 1024
    $region37: #{stacked_autoencoder_forward.1} parent=1 // pred_fallthru
      _
    // Predicated region
    $region38: #{stacked_autoencoder_forward.1} parent=1 // pred_check
      _
    $region39: #{stacked_autoencoder_forward.1} parent=1 // pred_check_branch
      %65 = sbr.rel (0) target = $region41
    $region40: #{stacked_autoencoder_forward.1} parent=1 // pred_region
      %66 = dma.done [#allocation5], 1024
    $region41: #{stacked_autoencoder_forward.1} parent=1 // pred_fallthru
      _
    %v68 = vld [vmem:[%s0] sm:$0xff]
    %v69 = vld [vmem:[%s0 + $0x8] sm:$0xff]
    %v70 = vpack.c.bf16 %v69, %v68
    %v71 = vld [vmem:[#allocation2] sm:$0xf]
    %v72 = vld [vmem:[#allocation2 + $0x4] sm:$0xf]
    %v73 = vld [vmem:[#allocation2 + $0x8] sm:$0xf]
    %v74 = vld [vmem:[#allocation2 + $0xc] sm:$0xf]
    %v75 = vld [vmem:[#allocation2 + $0x10] sm:$0xf]
    %v76 = vld [vmem:[#allocation2 + $0x14] sm:$0xf]
    %v77 = vld [vmem:[#allocation2 + $0x18] sm:$0xf]
    %v78 = vld [vmem:[#allocation2 + $0x1c] sm:$0xf]
    %v79 = vld [vmem:[%s2] sm:$0x1]
    %v81 = vlaneseq
    %v82 = vshrl.u32 %v81, 7
    %v83 = vsub.s32 0, %v82
    %v84 = vrot.slane %v79, %v83
    %v94 = vunpack.c.l.b16 %v71
    %v95 = vunpack.c.l.b16 %v72
    %v96 = vunpack.c.l.b16 %v73
    %v97 = vunpack.c.l.b16 %v74
    %v98 = vunpack.c.l.b16 %v75
    %v99 = vunpack.c.l.b16 %v76
    %v100 = vunpack.c.l.b16 %v77
    %v101 = vunpack.c.l.b16 %v78
    %v102 = vpack.c.b16 %v95, %v94
    %v103 = vpack.c.b16 %v97, %v96
    %v104 = vpack.c.b16 %v99, %v98
    %v105 = vpack.c.b16 %v101, %v100
    %vm110 = vcmask 523264
    %v112 = vsel %vm110, %v70, 0
    %114 = vmatprep.subr.bf16.mxu0 0
    %115 = vmatpush1.bf16.msra.mxu0 %v102
    %116 = vmatprep.subr.bf16.mxu0 0
    %117 = vmatpush1.bf16.msra.mxu0 %v103
    %118 = vmatprep.subr.bf16.mxu0 0
    %119 = vmatpush1.bf16.msra.mxu0 %v104
    %120 = vmatprep.subr.bf16.mxu0 0
    %121 = vmatpush1.bf16.msra.mxu0 %v105
    %122 = vmatprep.subr.bf16.mxu0 0
    %123 = vmatpush1.bf16.msra.mxu0 0
    %124 = vmatprep.subr.bf16.mxu0 0
    %125 = vmatpush1.bf16.msra.mxu0 0
    %126 = vmatprep.subr.bf16.mxu0 0
    %127 = vmatpush1.bf16.msra.mxu0 0
    %128 = vmatprep.subr.bf16.mxu0 0
    %129 = vmatpush1.bf16.msra.mxu0 0
    %130 = vmatprep.subr.bf16.mxu0 0
    %131 = vmatpush1.bf16.msra.mxu0 0
    %132 = vmatprep.subr.bf16.mxu0 0
    %133 = vmatpush1.bf16.msra.mxu0 0
    %134 = vmatprep.subr.bf16.mxu0 0
    %135 = vmatpush1.bf16.msra.mxu0 0
    %136 = vmatprep.subr.bf16.mxu0 0
    %137 = vmatpush1.bf16.msra.mxu0 0
    %138 = vmatprep.subr.bf16.mxu0 0
    %139 = vmatpush1.bf16.msra.mxu0 0
    %140 = vmatprep.subr.bf16.mxu0 0
    %141 = vmatpush1.bf16.msra.mxu0 0
    %142 = vmatprep.subr.bf16.mxu0 0
    %143 = vmatpush1.bf16.msra.mxu0 0
    %144 = vmatprep.subr.bf16.mxu0 0
    %145 = vmatpush1.bf16.msra.mxu0 0
    %146 = vmatprep.mubr.bf16.mxu0 0
    %147 = vmatmul.mubr.bf16.gmra.mrb[0].mxu0 %v112
    %v148 = vpop.f32.mrb[0].mxu0
    %v149 = vadd.f32 %v84, %v148
    %v150 = vpop.f32.mrb[0].mxu0
    %v151 = vpop.f32.mrb[0].mxu0
    %v152 = vadd.f32 %v84, %v151
    %v153 = vpop.f32.mrb[0].mxu0
    %154 = vdwg.mxu0
    %v155 = vmax.f32 %v149, 0.0
    %v156 = vmax.f32 %v152, 0.0
    %v157 = vpack.c.bf16 %v156, %v155
    %v158 = vld [vmem:[#allocation4] sm:$0xf]
    %v159 = vld [vmem:[#allocation4 + $0x4] sm:$0xf]
    %v160 = vld [vmem:[#allocation4 + $0x8] sm:$0xf]
    %v161 = vld [vmem:[#allocation4 + $0xc] sm:$0xf]
    %v162 = vld [vmem:[#allocation4 + $0x10] sm:$0xf]
    %v163 = vld [vmem:[#allocation4 + $0x14] sm:$0xf]
    %v164 = vld [vmem:[#allocation4 + $0x18] sm:$0xf]
    %v165 = vld [vmem:[#allocation4 + $0x1c] sm:$0xf]
    %v166 = vld [vmem:[#allocation4 + $0x20] sm:$0xf]
    %v167 = vld [vmem:[#allocation4 + $0x24] sm:$0xf]
    %v168 = vld [vmem:[#allocation4 + $0x28] sm:$0xf]
    %v169 = vld [vmem:[#allocation4 + $0x2c] sm:$0xf]
    %v170 = vld [vmem:[#allocation4 + $0x30] sm:$0xf]
    %v171 = vld [vmem:[#allocation4 + $0x34] sm:$0xf]
    %v172 = vld [vmem:[#allocation4 + $0x38] sm:$0xf]
    %v173 = vld [vmem:[#allocation4 + $0x3c] sm:$0xf]
    %v174 = vld [vmem:[%s4] sm:$0x1]
    %v176 = vlaneseq
    %v177 = vshrl.u32 %v176, 7
    %v178 = vsub.s32 0, %v177
    %v179 = vrot.slane %v174, %v178
    %v197 = vunpack.c.l.b16 %v158
    %v198 = vunpack.c.l.b16 %v159
    %v199 = vunpack.c.l.b16 %v160
    %v200 = vunpack.c.l.b16 %v161
    %v201 = vunpack.c.l.b16 %v162
    %v202 = vunpack.c.l.b16 %v163
    %v203 = vunpack.c.l.b16 %v164
    %v204 = vunpack.c.l.b16 %v165
    %v205 = vunpack.c.l.b16 %v166
    %v206 = vunpack.c.l.b16 %v167
    %v207 = vunpack.c.l.b16 %v168
    %v208 = vunpack.c.l.b16 %v169
    %v209 = vunpack.c.l.b16 %v170
    %v210 = vunpack.c.l.b16 %v171
    %v211 = vunpack.c.l.b16 %v172
    %v212 = vunpack.c.l.b16 %v173
    %v213 = vpack.c.b16 %v198, %v197
    %v214 = vpack.c.b16 %v200, %v199
    %v215 = vpack.c.b16 %v202, %v201
    %v216 = vpack.c.b16 %v204, %v203
    %v217 = vpack.c.b16 %v206, %v205
    %v218 = vpack.c.b16 %v208, %v207
    %v219 = vpack.c.b16 %v210, %v209
    %v220 = vpack.c.b16 %v212, %v211
    %229 = vmatprep.subr.bf16.mxu0 0
    %230 = vmatpush1.bf16.msra.mxu0 %v213
    %231 = vmatprep.subr.bf16.mxu0 0
    %232 = vmatpush1.bf16.msra.mxu0 %v214
    %233 = vmatprep.subr.bf16.mxu0 0
    %234 = vmatpush1.bf16.msra.mxu0 %v215
    %235 = vmatprep.subr.bf16.mxu0 0
    %236 = vmatpush1.bf16.msra.mxu0 %v216
    %237 = vmatprep.subr.bf16.mxu0 0
    %238 = vmatpush1.bf16.msra.mxu0 %v217
    %239 = vmatprep.subr.bf16.mxu0 0
    %240 = vmatpush1.bf16.msra.mxu0 %v218
    %241 = vmatprep.subr.bf16.mxu0 0
    %242 = vmatpush1.bf16.msra.mxu0 %v219
    %243 = vmatprep.subr.bf16.mxu0 0
    %244 = vmatpush1.bf16.msra.mxu0 %v220
    %245 = vmatprep.subr.bf16.mxu0 0
    %246 = vmatpush1.bf16.msra.mxu0 0
    %247 = vmatprep.subr.bf16.mxu0 0
    %248 = vmatpush1.bf16.msra.mxu0 0
    %249 = vmatprep.subr.bf16.mxu0 0
    %250 = vmatpush1.bf16.msra.mxu0 0
    %251 = vmatprep.subr.bf16.mxu0 0
    %252 = vmatpush1.bf16.msra.mxu0 0
    %253 = vmatprep.subr.bf16.mxu0 0
    %254 = vmatpush1.bf16.msra.mxu0 0
    %255 = vmatprep.subr.bf16.mxu0 0
    %256 = vmatpush1.bf16.msra.mxu0 0
    %257 = vmatprep.subr.bf16.mxu0 0
    %258 = vmatpush1.bf16.msra.mxu0 0
    %259 = vmatprep.subr.bf16.mxu0 0
    %260 = vmatpush1.bf16.msra.mxu0 0
    %261 = vmatprep.mubr.bf16.mxu0 0
    %262 = vmatmul.mubr.bf16.gmra.mrb[0].mxu0 %v157
    %v263 = vpop.f32.mrb[0].mxu0
    %v264 = vadd.f32 %v179, %v263
    %v265 = vpop.f32.mrb[0].mxu0
    %v266 = vpop.f32.mrb[0].mxu0
    %v267 = vadd.f32 %v179, %v266
    %v268 = vpop.f32.mrb[0].mxu0
    %269 = vdwg.mxu0
    %v270 = vmax.f32 %v264, 0.0
    %v271 = vmax.f32 %v267, 0.0
    %v272 = vpack.c.bf16 %v271, %v270
    %v273 = vld [vmem:[#allocation6] sm:$0xf]
    %v274 = vld [vmem:[#allocation6 + $0x4] sm:$0xf]
    %v275 = vld [vmem:[#allocation6 + $0x8] sm:$0xf]
    %v276 = vld [vmem:[#allocation6 + $0xc] sm:$0xf]
    %v277 = vld [vmem:[#allocation6 + $0x10] sm:$0xf]
    %v278 = vld [vmem:[#allocation6 + $0x14] sm:$0xf]
    %v279 = vld [vmem:[#allocation6 + $0x18] sm:$0xf]
    %v280 = vld [vmem:[#allocation6 + $0x1c] sm:$0xf]
    %v281 = vld [vmem:[#allocation6 + $0x20] sm:$0xf]
    %v282 = vld [vmem:[#allocation6 + $0x24] sm:$0xf]
    %v283 = vld [vmem:[#allocation6 + $0x28] sm:$0xf]
    %v284 = vld [vmem:[#allocation6 + $0x2c] sm:$0xf]
    %v285 = vld [vmem:[#allocation6 + $0x30] sm:$0xf]
    %v286 = vld [vmem:[#allocation6 + $0x34] sm:$0xf]
    %v287 = vld [vmem:[#allocation6 + $0x38] sm:$0xf]
    %v288 = vld [vmem:[#allocation6 + $0x3c] sm:$0xf]
    %v289 = vld [vmem:[%s6] sm:$0x1]
    %v291 = vlaneseq
    %v292 = vshrl.u32 %v291, 7
    %v293 = vsub.s32 0, %v292
    %v294 = vrot.slane %v289, %v293
    %v312 = vunpack.c.l.b16 %v273
    %v313 = vunpack.c.l.b16 %v274
    %v314 = vunpack.c.l.b16 %v275
    %v315 = vunpack.c.l.b16 %v276
    %v316 = vunpack.c.l.b16 %v277
    %v317 = vunpack.c.l.b16 %v278
    %v318 = vunpack.c.l.b16 %v279
    %v319 = vunpack.c.l.b16 %v280
    %v320 = vunpack.c.l.b16 %v281
    %v321 = vunpack.c.l.b16 %v282
    %v322 = vunpack.c.l.b16 %v283
    %v323 = vunpack.c.l.b16 %v284
    %v324 = vunpack.c.l.b16 %v285
    %v325 = vunpack.c.l.b16 %v286
    %v326 = vunpack.c.l.b16 %v287
    %v327 = vunpack.c.l.b16 %v288
    %v328 = vpack.c.b16 %v313, %v312
    %v329 = vpack.c.b16 %v315, %v314
    %v330 = vpack.c.b16 %v317, %v316
    %v331 = vpack.c.b16 %v319, %v318
    %v332 = vpack.c.b16 %v321, %v320
    %v333 = vpack.c.b16 %v323, %v322
    %v334 = vpack.c.b16 %v325, %v324
    %v335 = vpack.c.b16 %v327, %v326
    %344 = vmatprep.subr.bf16.mxu0 0
    %345 = vmatpush1.bf16.msra.mxu0 %v328
    %346 = vmatprep.subr.bf16.mxu0 0
    %347 = vmatpush1.bf16.msra.mxu0 %v329
    %348 = vmatprep.subr.bf16.mxu0 0
    %349 = vmatpush1.bf16.msra.mxu0 %v330
    %350 = vmatprep.subr.bf16.mxu0 0
    %351 = vmatpush1.bf16.msra.mxu0 %v331
    %352 = vmatprep.subr.bf16.mxu0 0
    %353 = vmatpush1.bf16.msra.mxu0 %v332
    %354 = vmatprep.subr.bf16.mxu0 0
    %355 = vmatpush1.bf16.msra.mxu0 %v333
    %356 = vmatprep.subr.bf16.mxu0 0
    %357 = vmatpush1.bf16.msra.mxu0 %v334
    %358 = vmatprep.subr.bf16.mxu0 0
    %359 = vmatpush1.bf16.msra.mxu0 %v335
    %360 = vmatprep.subr.bf16.mxu0 0
    %361 = vmatpush1.bf16.msra.mxu0 0
    %362 = vmatprep.subr.bf16.mxu0 0
    %363 = vmatpush1.bf16.msra.mxu0 0
    %364 = vmatprep.subr.bf16.mxu0 0
    %365 = vmatpush1.bf16.msra.mxu0 0
    %366 = vmatprep.subr.bf16.mxu0 0
    %367 = vmatpush1.bf16.msra.mxu0 0
    %368 = vmatprep.subr.bf16.mxu0 0
    %369 = vmatpush1.bf16.msra.mxu0 0
    %370 = vmatprep.subr.bf16.mxu0 0
    %371 = vmatpush1.bf16.msra.mxu0 0
    %372 = vmatprep.subr.bf16.mxu0 0
    %373 = vmatpush1.bf16.msra.mxu0 0
    %374 = vmatprep.subr.bf16.mxu0 0
    %375 = vmatpush1.bf16.msra.mxu0 0
    %376 = vmatprep.mubr.bf16.mxu0 0
    %377 = vmatmul.mubr.bf16.gmra.mrb[0].mxu0 %v272
    %v378 = vpop.f32.mrb[0].mxu0
    %v379 = vadd.f32 %v294, %v378
    %v380 = vpop.f32.mrb[0].mxu0
    %v381 = vpop.f32.mrb[0].mxu0
    %v382 = vadd.f32 %v294, %v381
    %v383 = vpop.f32.mrb[0].mxu0
    %384 = vdwg.mxu0
    %v385 = vpack.c.bf16 %v382, %v379
    %v387 = vunpack.c.l.b16 %v385
    %v388 = vunpack.c.h.b16 %v385
    %v389 = vpack.c.b16 %v387, %v387
    %v390 = vpack.c.b16 %v388, %v388
    %393 = vst [vmem:[%s7] sm:$0xf] %v389
    %394 = vst [vmem:[%s7 + $0x4] sm:$0xf] %v390
    // Predicated region
    $region42: #{stacked_autoencoder_forward.1} parent=1 // pred_check
      _
    $region43: #{stacked_autoencoder_forward.1} parent=1 // pred_check_branch
      %396 = sbr.rel (0) target = $region45
    $region44: #{stacked_autoencoder_forward.1} parent=1 // pred_region
      _
    $region45: #{stacked_autoencoder_forward.1} parent=1 // pred_fallthru
      _
    // Predicated region
    $region46: #{stacked_autoencoder_forward.1} parent=1 // pred_check
      _
    $region47: #{stacked_autoencoder_forward.1} parent=1 // pred_check_branch
      %398 = sbr.rel (0) target = $region49
    $region48: #{stacked_autoencoder_forward.1} parent=1 // pred_region
      _
    $region49: #{stacked_autoencoder_forward.1} parent=1 // pred_fallthru
      _
    %399 = vsyncpa [#allocation3], 1
    %400 = vsyncpa [#allocation5], 1

</llo_original>
